<compile_context>
chip_gen: v5e
topology: v5e:2x2
jax: 0.10.0
libtpu: 0.0.40
codegen_flags: <defaults>
</compile_context>

<pallas_src>
import functools

import jax
import jax.numpy as jnp
from jax.experimental import pallas as pl
from jax.experimental.pallas import tpu as pltpu

META_FEATURES = 8      # stand-in for len(ALBERT_META_FEATURES)
BERT_HIDDEN   = 32     # stand-in for AutoModel(...).config.hidden_size ('comment' arch)
HIDDEN_COMB   = 128    # linear_comb output width
DROPOUT_P     = 0.25

# TODO(synk): BertWrapper / pretrained ALBERT encoder is not implemented; the
# kernel consumes the [B, hidden] CLS embedding directly as `text_hidden`.


def _linreg_head_kernel(training, total_rows,
                        seed_ref,        # SMEM (1,) int32   dropout seed
                        fsc_ref,         # SMEM (2,) f32     [prelu_alpha, b_out + b_lin]
                        text_ref,        # VMEM [TB, H]      CLS embedding tile
                        meta_ref,        # VMEM [TB, F]      meta-feature tile
                        labels_ref,      # VMEM [TB, 1]
                        w_text_ref,      # VMEM [H, 128]     linear_comb (text part)
                        w_meta_ref,      # VMEM [F, 128]     linear_comb (meta part)
                        b_comb_ref,      # VMEM [1, 128]
                        w_out_ref,       # VMEM [1, 128]     output head (row vector)
                        w_lin_ref,       # VMEM [1, F]       frozen linear (row vector)
                        loss_ref,        # out: [1, 1]       accumulated SSE -> mean
                        out_ref):        # out: [TB, 1]
    i = pl.program_id(0)

    xt = text_ref[...]
    xm = meta_ref[...]          # raw meta: the frozen linear uses un-dropped features

    xt_c, xm_c = xt, xm
    if training:
        # nn.Dropout(0.25) on the concatenated [text, meta] features.  Dropping
        # text and meta with independent masks is equivalent to dropping the
        # concatenation (elementwise independent Bernoulli).
        pltpu.prng_seed(seed_ref[0] + i)
        scale = 1.0 / (1.0 - DROPOUT_P)
        thresh = jnp.uint32(int(DROPOUT_P * (2 ** 32)))
        bits_t = pltpu.bitcast(pltpu.prng_random_bits(xt.shape), jnp.uint32)
        bits_m = pltpu.bitcast(pltpu.prng_random_bits(xm.shape), jnp.uint32)
        xt_c = jnp.where(bits_t >= thresh, xt * scale, 0.0)
        xm_c = jnp.where(bits_m >= thresh, xm * scale, 0.0)

    # linear_comb on the MXU: [TB,H]@[H,128] + [TB,F]@[F,128] + b
    h = (jnp.dot(xt_c, w_text_ref[...], preferred_element_type=jnp.float32)
         + jnp.dot(xm_c, w_meta_ref[...], preferred_element_type=jnp.float32)
         + b_comb_ref[...])

    # PReLU (single shared slope, read from SMEM scalar).
    a = fsc_ref[0]
    h = jnp.where(h > 0, h, a * h)

    # Output head + frozen linear(meta): N=1 contractions done on the VPU/XLU
    # (elementwise multiply + lane reduction) instead of wasting an MXU tile.
    o = (jnp.sum(h * w_out_ref[...], axis=-1, keepdims=True)
         + jnp.sum(xm * w_lin_ref[...], axis=-1, keepdims=True)
         + fsc_ref[1])                                # folded b_out + b_lin
    out_ref[...] = o

    # MSELoss(reduction='mean'): accumulate SSE across batch tiles in the
    # resident (1,1) loss block, divide by N on the last tile.
    @pl.when(i == 0)
    def _():
        loss_ref[...] = jnp.zeros_like(loss_ref)

    diff = o - labels_ref[...]
    loss_ref[...] += jnp.sum(diff * diff, axis=(0, 1), keepdims=True)

    @pl.when(i == pl.num_programs(0) - 1)
    def _():
        loss_ref[...] = loss_ref[...] * (1.0 / total_rows)


def linreg_forward(text_hidden, meta, labels, params, *,
                   training=False, seed=0, tile_b=None):
    """Returns (loss_scalar, output[B,1]) — mirrors LinRegModel.forward."""
    B, H = text_hidden.shape
    F = meta.shape[1]
    if tile_b is None:
        tile_b = B if B <= 256 else 256
    assert B % tile_b == 0 and (tile_b % 8 == 0 or tile_b == B)

    text32 = text_hidden.astype(jnp.float32)
    meta32 = meta.astype(jnp.float32)
    labels32 = labels.reshape(B, 1).astype(jnp.float32)
    seed_arr = jnp.array([seed], dtype=jnp.int32)
    # Fold the two (frozen) scalar biases into one constant; ship the PReLU
    # slope alongside it in a single SMEM array.
    fscalars = jnp.stack([params["prelu_a"],
                          params["b_out"] + params["b_lin"]]).astype(jnp.float32)

    grid = (B // tile_b,)
    row = lambda i: (i, 0)    # batch-tiled operands
    rep = lambda i: (0, 0)    # resident weights / loss block

    smem = pl.BlockSpec(memory_space=pltpu.MemorySpace.SMEM)
    kernel = functools.partial(_linreg_head_kernel, training, float(B))

    loss, out = pl.pallas_call(
        kernel,
        out_shape=(jax.ShapeDtypeStruct((1, 1), jnp.float32),
                   jax.ShapeDtypeStruct((B, 1), jnp.float32)),
        grid=grid,
        in_specs=[
            smem,                                      # seed
            smem,                                      # [prelu_a, b_out+b_lin]
            pl.BlockSpec((tile_b, H), row),            # text_hidden
            pl.BlockSpec((tile_b, F), row),            # meta
            pl.BlockSpec((tile_b, 1), row),            # labels
            pl.BlockSpec((H, HIDDEN_COMB), rep),       # w_text
            pl.BlockSpec((F, HIDDEN_COMB), rep),       # w_meta
            pl.BlockSpec((1, HIDDEN_COMB), rep),       # b_comb
            pl.BlockSpec((1, HIDDEN_COMB), rep),       # w_out (row vector)
            pl.BlockSpec((1, F), rep),                 # w_lin (row vector)
        ],
        out_specs=(pl.BlockSpec((1, 1), rep),          # loss (accumulated)
                   pl.BlockSpec((tile_b, 1), row)),    # output
        # Loss is accumulated across the batch axis -> sequential ("arbitrary").
        compiler_params=pltpu.CompilerParams(
            dimension_semantics=("arbitrary",)),
    )(seed_arr, fscalars, text32, meta32, labels32,
      params["w_text"], params["w_meta"], params["b_comb"],
      params["w_out"], params["w_lin"])
    return loss[0, 0], out


def init_params(key, coeffs):
    """Deterministic parameter init matching the module's layer shapes."""
    k1, k2, k3 = jax.random.split(key, 3)
    return {
        # linear_comb: Linear(bert.output_dim + LINEAR_FEATURES, 128), split by input
        "w_text": jax.random.normal(k1, (BERT_HIDDEN, HIDDEN_COMB), jnp.float32) * 0.02,
        "w_meta": jax.random.normal(k2, (META_FEATURES, HIDDEN_COMB), jnp.float32) * 0.02,
        "b_comb": jnp.zeros((1, HIDDEN_COMB), jnp.float32),
        # output: Linear(128, 1) — stored as a lane-row vector
        "w_out": jax.random.normal(k3, (1, HIDDEN_COMB), jnp.float32) * 0.02,
        "b_out": jnp.zeros((), jnp.float32),
        # linear: Linear(LINEAR_FEATURES, 1) — frozen, weight copied from coeffs
        "w_lin": jnp.asarray(coeffs, jnp.float32).reshape(1, META_FEATURES),
        "b_lin": jnp.zeros((), jnp.float32),
        # PReLU: single parameter, torch default init 0.25
        "prelu_a": jnp.asarray(0.25, jnp.float32),
    }


def _reference_forward(text_hidden, meta, labels, params):
    """Pure-JAX reference of the same head (eval mode, dropout = identity)."""
    h = text_hidden @ params["w_text"] + meta @ params["w_meta"] + params["b_comb"]
    a = params["prelu_a"]
    h = jnp.where(h > 0, h, a * h)
    o = jnp.sum(h * params["w_out"], axis=-1, keepdims=True) + params["b_out"]
    o = o + jnp.sum(meta * params["w_lin"], axis=-1, keepdims=True) + params["b_lin"]
    diff = o.reshape(-1) - labels.reshape(-1)
    return jnp.mean(diff * diff), o


if __name__ == "__main__":
    key = jax.random.PRNGKey(0)
    k_th, k_meta, k_lab, k_par, k_coef = jax.random.split(key, 5)

    B = 8
    # "CLS" embedding that BertWrapper would have produced (see TODO above).
    text_hidden = jax.random.normal(k_th, (B, BERT_HIDDEN), jnp.float32)
    meta_features = jax.random.normal(k_meta, (B, META_FEATURES), jnp.float32)
    labels = jax.random.normal(k_lab, (B,), jnp.float32)
    coeffs = jax.random.normal(k_coef, (META_FEATURES,), jnp.float32)

    params = init_params(k_par, coeffs)

    loss, out = linreg_forward(text_hidden, meta_features, labels, params,
                               training=False)
    loss = jax.block_until_ready(loss)
    out = jax.block_until_ready(out)

    ref_loss, ref_out = _reference_forward(text_hidden, meta_features, labels, params)
    assert out.shape == (B, 1)
    assert jnp.allclose(out, ref_out, atol=1e-5, rtol=1e-5)
    assert jnp.allclose(loss, ref_loss, atol=1e-5, rtol=1e-5)

    print("KERNEL_OK")
</pallas_src>

<mosaic_0001>
module attributes {stable_mosaic.version = 11 : i64} {
  func.func @_linreg_head_kernel(%arg0: i32, %arg1: memref<1xi32, #tpu.memory_space<smem>>, %arg2: memref<2xf32, #tpu.memory_space<smem>>, %arg3: memref<8x32xf32, #tpu.memory_space<vmem>>, %arg4: memref<8x8xf32, #tpu.memory_space<vmem>>, %arg5: memref<8x1xf32, #tpu.memory_space<vmem>>, %arg6: memref<32x128xf32, #tpu.memory_space<vmem>>, %arg7: memref<8x128xf32, #tpu.memory_space<vmem>>, %arg8: memref<1x128xf32, #tpu.memory_space<vmem>>, %arg9: memref<1x128xf32, #tpu.memory_space<vmem>>, %arg10: memref<1x8xf32, #tpu.memory_space<vmem>>, %arg11: memref<1x1xf32, #tpu.memory_space<vmem>>, %arg12: memref<8x1xf32, #tpu.memory_space<vmem>>) attributes {dimension_semantics = [#tpu.dimension_semantics<arbitrary>], iteration_bounds = array<i64: 1>, scalar_prefetch = 0 : i64, scratch_operands = 0 : i64, tpu.core_type = #tpu.core_type<tc>, window_params = [{transform_indices = @transform_0, window_bounds = array<i64: 1>}, {transform_indices = @transform_1, window_bounds = array<i64: 2>}, {transform_indices = @transform_2, window_bounds = array<i64: 8, 32>}, {transform_indices = @transform_3, window_bounds = array<i64: 8, 8>}, {transform_indices = @transform_4, window_bounds = array<i64: 8, 1>}, {pipeline_mode = #tpu.pipeline_mode<synchronous>, transform_indices = @transform_5, window_bounds = array<i64: 32, 128>}, {pipeline_mode = #tpu.pipeline_mode<synchronous>, transform_indices = @transform_6, window_bounds = array<i64: 8, 128>}, {pipeline_mode = #tpu.pipeline_mode<synchronous>, transform_indices = @transform_7, window_bounds = array<i64: 1, 128>}, {pipeline_mode = #tpu.pipeline_mode<synchronous>, transform_indices = @transform_8, window_bounds = array<i64: 1, 128>}, {pipeline_mode = #tpu.pipeline_mode<synchronous>, transform_indices = @transform_9, window_bounds = array<i64: 1, 8>}, {pipeline_mode = #tpu.pipeline_mode<synchronous>, transform_indices = @transform_10, window_bounds = array<i64: 1, 1>}, {transform_indices = @transform_11, window_bounds = array<i64: 8, 1>}]} {
    %c0 = arith.constant 0 : index
    %c0_0 = arith.constant 0 : index
    %0 = vector.load %arg3[%c0, %c0_0] : memref<8x32xf32, #tpu.memory_space<vmem>>, vector<8x32xf32>
    %c0_1 = arith.constant 0 : index
    %c0_2 = arith.constant 0 : index
    %1 = vector.load %arg4[%c0_1, %c0_2] : memref<8x8xf32, #tpu.memory_space<vmem>>, vector<8x8xf32>
    %c0_3 = arith.constant 0 : index
    %c0_4 = arith.constant 0 : index
    %2 = vector.load %arg6[%c0_3, %c0_4] : memref<32x128xf32, #tpu.memory_space<vmem>>, vector<32x128xf32>
    %cst = arith.constant dense<0.000000e+00> : vector<8x128xf32>
    %3 = tpu.matmul %0, %2, %cst {dimension_numbers = #tpu.dot_dimension_numbers<[1], [0], [0], [1], [0, 0, 1, 1], [], []>} : vector<8x32xf32>, vector<32x128xf32>, vector<8x128xf32> -> vector<8x128xf32>
    %c0_5 = arith.constant 0 : index
    %c0_6 = arith.constant 0 : index
    %4 = vector.load %arg7[%c0_5, %c0_6] : memref<8x128xf32, #tpu.memory_space<vmem>>, vector<8x128xf32>
    %cst_7 = arith.constant dense<0.000000e+00> : vector<8x128xf32>
    %5 = tpu.matmul %1, %4, %cst_7 {dimension_numbers = #tpu.dot_dimension_numbers<[1], [0], [0], [1], [0, 0, 1, 1], [], []>} : vector<8x8xf32>, vector<8x128xf32>, vector<8x128xf32> -> vector<8x128xf32>
    %6 = arith.addf %3, %5 : vector<8x128xf32>
    %c0_8 = arith.constant 0 : index
    %c0_9 = arith.constant 0 : index
    %7 = vector.load %arg8[%c0_8, %c0_9] : memref<1x128xf32, #tpu.memory_space<vmem>>, vector<1x128xf32>
    %8 = vector.broadcast %7 : vector<1x128xf32> to vector<8x128xf32>
    %9 = arith.addf %6, %8 : vector<8x128xf32>
    %c0_10 = arith.constant 0 : index
    %10 = memref.load %arg2[%c0_10] : memref<2xf32, #tpu.memory_space<smem>>
    %cst_11 = arith.constant 0.000000e+00 : f32
    %11 = vector.broadcast %cst_11 : f32 to vector<8x128xf32>
    %12 = arith.cmpf ogt, %9, %11 : vector<8x128xf32>
    %13 = vector.broadcast %10 : f32 to vector<8x128xf32>
    %14 = arith.mulf %13, %9 : vector<8x128xf32>
    %15 = arith.select %12, %9, %14 : vector<8x128xi1>, vector<8x128xf32>
    %c0_12 = arith.constant 0 : index
    %c0_13 = arith.constant 0 : index
    %16 = vector.load %arg9[%c0_12, %c0_13] : memref<1x128xf32, #tpu.memory_space<vmem>>, vector<1x128xf32>
    %17 = vector.broadcast %16 : vector<1x128xf32> to vector<8x128xf32>
    %18 = arith.mulf %15, %17 : vector<8x128xf32>
    %cst_14 = arith.constant dense<0.000000e+00> : vector<8xf32>
    %19 = vector.multi_reduction <add>, %18, %cst_14 [1] : vector<8x128xf32> to vector<8xf32>
    %20 = vector.shape_cast %19 : vector<8xf32> to vector<8x1xf32>
    %c0_15 = arith.constant 0 : index
    %c0_16 = arith.constant 0 : index
    %21 = vector.load %arg10[%c0_15, %c0_16] : memref<1x8xf32, #tpu.memory_space<vmem>>, vector<1x8xf32>
    %22 = vector.broadcast %21 : vector<1x8xf32> to vector<8x8xf32>
    %23 = arith.mulf %1, %22 : vector<8x8xf32>
    %cst_17 = arith.constant dense<0.000000e+00> : vector<8xf32>
    %24 = vector.multi_reduction <add>, %23, %cst_17 [1] : vector<8x8xf32> to vector<8xf32>
    %25 = vector.shape_cast %24 : vector<8xf32> to vector<8x1xf32>
    %26 = arith.addf %20, %25 : vector<8x1xf32>
    %c1 = arith.constant 1 : index
    %27 = memref.load %arg2[%c1] : memref<2xf32, #tpu.memory_space<smem>>
    %28 = vector.broadcast %27 : f32 to vector<8x1xf32>
    %29 = arith.addf %26, %28 : vector<8x1xf32>
    %c0_18 = arith.constant 0 : index
    %c0_19 = arith.constant 0 : index
    %30 = vector.load %arg12[%c0_18, %c0_19] : memref<8x1xf32, #tpu.memory_space<vmem>>, vector<8x1xf32>
    tpu.vector_store %arg12[%c0_18, %c0_19], %29 {strides = array<i32>} : memref<8x1xf32, #tpu.memory_space<vmem>>, vector<8x1xf32>,
    %c0_i32 = arith.constant 0 : i32
    %31 = arith.cmpi eq, %arg0, %c0_i32 : i32
    %32 = arith.extui %31 : i1 to i32
    %c0_i32_20 = arith.constant 0 : i32
    %33 = arith.cmpi ne, %32, %c0_i32_20 : i32
    scf.if %33 {
      %cst_30 = arith.constant 0.000000e+00 : f32
      %48 = vector.broadcast %cst_30 : f32 to vector<1x1xf32>
      %c0_31 = arith.constant 0 : index
      %c0_32 = arith.constant 0 : index
      %49 = vector.load %arg11[%c0_31, %c0_32] : memref<1x1xf32, #tpu.memory_space<vmem>>, vector<1x1xf32>
      tpu.vector_store %arg11[%c0_31, %c0_32], %48 {strides = array<i32>} : memref<1x1xf32, #tpu.memory_space<vmem>>, vector<1x1xf32>,
    } else {
    }
    %c0_21 = arith.constant 0 : index
    %c0_22 = arith.constant 0 : index
    %34 = vector.load %arg5[%c0_21, %c0_22] : memref<8x1xf32, #tpu.memory_space<vmem>>, vector<8x1xf32>
    %35 = arith.subf %29, %34 : vector<8x1xf32>
    %c0_23 = arith.constant 0 : index
    %c0_24 = arith.constant 0 : index
    %36 = vector.load %arg11[%c0_23, %c0_24] : memref<1x1xf32, #tpu.memory_space<vmem>>, vector<1x1xf32>
    %37 = arith.mulf %35, %35 : vector<8x1xf32>
    %38 = vector.shape_cast %37 : vector<8x1xf32> to vector<1x8x1xf32>
    %cst_25 = arith.constant dense<0.000000e+00> : vector<1xf32>
    %39 = vector.multi_reduction <add>, %38, %cst_25 [1, 2] : vector<1x8x1xf32> to vector<1xf32>
    %40 = vector.shape_cast %39 : vector<1xf32> to vector<1x1x1xf32>
    %41 = vector.extract %40[0, 0, 0] : f32 from vector<1x1x1xf32>
    %42 = vector.broadcast %41 : f32 to vector<1x1xf32>
    %43 = arith.addf %36, %42 : vector<1x1xf32>
    %c0_26 = arith.constant 0 : index
    %c0_27 = arith.constant 0 : index
    %44 = vector.load %arg11[%c0_26, %c0_27] : memref<1x1xf32, #tpu.memory_space<vmem>>, vector<1x1xf32>
    tpu.vector_store %arg11[%c0_26, %c0_27], %43 {strides = array<i32>} : memref<1x1xf32, #tpu.memory_space<vmem>>, vector<1x1xf32>,
    %c0_i32_28 = arith.constant 0 : i32
    %45 = arith.cmpi eq, %arg0, %c0_i32_28 : i32
    %46 = arith.extui %45 : i1 to i32
    %c0_i32_29 = arith.constant 0 : i32
    %47 = arith.cmpi ne, %46, %c0_i32_29 : i32
    scf.if %47 {
      %c0_30 = arith.constant 0 : index
      %c0_31 = arith.constant 0 : index
      %48 = vector.load %arg11[%c0_30, %c0_31] : memref<1x1xf32, #tpu.memory_space<vmem>>, vector<1x1xf32>
      %cst_32 = arith.constant 1.250000e-01 : f32
      %49 = vector.broadcast %cst_32 : f32 to vector<1x1xf32>
      %50 = arith.mulf %48, %49 : vector<1x1xf32>
      %c0_33 = arith.constant 0 : index
      %c0_34 = arith.constant 0 : index
      %51 = vector.load %arg11[%c0_33, %c0_34] : memref<1x1xf32, #tpu.memory_space<vmem>>, vector<1x1xf32>
      tpu.vector_store %arg11[%c0_33, %c0_34], %50 {strides = array<i32>} : memref<1x1xf32, #tpu.memory_space<vmem>>, vector<1x1xf32>,
    } else {
    }
    return
  }
  func.func @transform_0(%arg0: i32) -> i32 {
    %c0_i32 = arith.constant 0 : i32
    %c0_i32_0 = arith.constant 0 : i32
    return %c0_i32 : i32
  }
  func.func @transform_1(%arg0: i32) -> i32 {
    %c0_i32 = arith.constant 0 : i32
    %c0_i32_0 = arith.constant 0 : i32
    return %c0_i32 : i32
  }
  func.func @transform_2(%arg0: i32) -> (i32, i32) {
    %c0_i32 = arith.constant 0 : i32
    %c0_i32_0 = arith.constant 0 : i32
    return %arg0, %c0_i32 : i32, i32
  }
  func.func @transform_3(%arg0: i32) -> (i32, i32) {
    %c0_i32 = arith.constant 0 : i32
    %c0_i32_0 = arith.constant 0 : i32
    return %arg0, %c0_i32 : i32, i32
  }
  func.func @transform_4(%arg0: i32) -> (i32, i32) {
    %c0_i32 = arith.constant 0 : i32
    %c0_i32_0 = arith.constant 0 : i32
    return %arg0, %c0_i32 : i32, i32
  }
  func.func @transform_5(%arg0: i32) -> (i32, i32) {
    %c0_i32 = arith.constant 0 : i32
    %c0_i32_0 = arith.constant 0 : i32
    %c0_i32_1 = arith.constant 0 : i32
    return %c0_i32, %c0_i32_0 : i32, i32
  }
  func.func @transform_6(%arg0: i32) -> (i32, i32) {
    %c0_i32 = arith.constant 0 : i32
    %c0_i32_0 = arith.constant 0 : i32
    %c0_i32_1 = arith.constant 0 : i32
    return %c0_i32, %c0_i32_0 : i32, i32
  }
  func.func @transform_7(%arg0: i32) -> (i32, i32) {
    %c0_i32 = arith.constant 0 : i32
    %c0_i32_0 = arith.constant 0 : i32
    %c0_i32_1 = arith.constant 0 : i32
    return %c0_i32, %c0_i32_0 : i32, i32
  }
  func.func @transform_8(%arg0: i32) -> (i32, i32) {
    %c0_i32 = arith.constant 0 : i32
    %c0_i32_0 = arith.constant 0 : i32
    %c0_i32_1 = arith.constant 0 : i32
    return %c0_i32, %c0_i32_0 : i32, i32
  }
  func.func @transform_9(%arg0: i32) -> (i32, i32) {
    %c0_i32 = arith.constant 0 : i32
    %c0_i32_0 = arith.constant 0 : i32
    %c0_i32_1 = arith.constant 0 : i32
    return %c0_i32, %c0_i32_0 : i32, i32
  }
  func.func @transform_10(%arg0: i32) -> (i32, i32) {
    %c0_i32 = arith.constant 0 : i32
    %c0_i32_0 = arith.constant 0 : i32
    %c0_i32_1 = arith.constant 0 : i32
    return %c0_i32, %c0_i32_0 : i32, i32
  }
  func.func @transform_11(%arg0: i32) -> (i32, i32) {
    %c0_i32 = arith.constant 0 : i32
    %c0_i32_0 = arith.constant 0 : i32
    return %arg0, %c0_i32 : i32, i32
  }
}

</mosaic_0001>

<llo_original>
// kernel: tpu_custom_call.1
$region0: #{tpu_custom_call.1}
  #allocation0 [shape = 'u32[]', space=smem, size = 0x4, offset = 0x4, fixed_abs, tag = 'smem constant byte address 0x4 - core index']
  #allocation1 [shape = 'u32[72,128]{1,0:T(1,128)}', space=vmem, size = 0x9000, scoped, tag = 'internal scratch']
  #allocation2 [shape = 's32[1]{0:T(128)S(6)}', space=smem, size = 0x200, scoped, tag = 'scoped memory for tpu_custom_call.1']
  %s0 = inlined_call_operand.<no memory space> [shape: s32[1], index: 0, kind: input, shape index: {}]
  %s1 = inlined_call_operand.vmem [shape: f32[2], index: 1, kind: input, shape index: {}]
  %s2 = inlined_call_operand.vmem [shape: f32[8,32], index: 2, kind: input, shape index: {}]
  %s3 = inlined_call_operand.hbm [shape: f32[8,8], index: 3, kind: input, shape index: {}]
  %s4 = inlined_call_operand.vmem [shape: f32[8,1], index: 4, kind: input, shape index: {}]
  %s5 = inlined_call_operand.hbm [shape: f32[32,128], index: 5, kind: input, shape index: {}]
  %s6 = inlined_call_operand.hbm [shape: f32[8,128], index: 6, kind: input, shape index: {}]
  %s7 = inlined_call_operand.vmem [shape: f32[1,128], index: 7, kind: input, shape index: {}]
  %s8 = inlined_call_operand.vmem [shape: f32[1,128], index: 8, kind: input, shape index: {}]
  %s9 = inlined_call_operand.vmem [shape: f32[1,8], index: 9, kind: input, shape index: {}]
  %s10 = inlined_call_operand.hbm [shape: f32[1,1], index: 10, kind: output, shape index: {0}]
  %s11 = inlined_call_operand.vmem [shape: f32[8,1], index: 11, kind: output, shape index: {1}]
  %12 = xla_tuple %s10, %s11
  %s13 = sld [smem:[#allocation0]]
  $region82: #{tpu_custom_call.1} parent=0
    _
  %s15 = ssub.s32 1, %s13
  %s16 = scalar_select 0, %s15, %s13
  %17 = sst [smem:[#allocation2]] %s0
  $region1: #{tpu_custom_call.1} parent=0
    #allocation3 [shape = 'u8[512]{0}', space=smem, size = 0x200, scoped, tag = 'input window, operand 1, single buffered']
    #allocation4 [shape = 's32[1]{0}', space=sflag, size = 0x4, scoped, tag = 'scoped memory for tpu_custom_call.1']
    #allocation5 [shape = 's32[1]{0}', space=sflag, size = 0x4, scoped, tag = 'scoped memory for tpu_custom_call.1']
    #allocation6 [shape = 's32[1]{0}', space=sflag, size = 0x4, scoped, tag = 'scoped memory for tpu_custom_call.1']
    #allocation7 [shape = 'u8[4096]{0}', space=vmem, size = 0x1000, scoped, tag = 'input window, operand 3, single buffered']
    #allocation8 [shape = 'u8[16384]{0}', space=vmem, size = 0x4000, scoped, tag = 'input window, operand 5, single buffered']
    #allocation9 [shape = 's32[1]{0}', space=sflag, size = 0x4, scoped, tag = 'scoped memory for tpu_custom_call.1']
    #allocation10 [shape = 'u8[4096]{0}', space=vmem, size = 0x1000, scoped, tag = 'input window, operand 6, single buffered']
    #allocation11 [shape = 'u8[512]{0}', space=vmem, size = 0x400, scoped, tag = 'output window, operand 0, single buffered']
    %18 = vsyncpa [#allocation6], 0
    %19 = vsyncpa [#allocation4], 0
    %20 = vsyncpa [#allocation9], 0
    %21 = vsyncpa [#allocation5], 0
    // Predicated region
    $region2: #{tpu_custom_call.1} parent=1 // pred_check
      _
    $region3: #{tpu_custom_call.1} parent=1 // pred_check_branch
      %23 = sbr.rel (0) target = $region5
    $region4: #{tpu_custom_call.1} parent=1 // pred_region
      _
    $region5: #{tpu_custom_call.1} parent=1 // pred_fallthru
      _
    // Predicated region
    $region6: #{tpu_custom_call.1} parent=1 // pred_check
      _
    $region7: #{tpu_custom_call.1} parent=1 // pred_check_branch
      %25 = sbr.rel (0) target = $region9
    $region8: #{tpu_custom_call.1} parent=1 // pred_region
      %27 = vsyncadd [#allocation6], 0
      %s29 = sshll.u32 %s1, 4
      %s30 = int_to_ptr.vmem [resolvable:$true] %s29
      %32 = dma.vmem_to_smem %s30, 16, [#allocation3], [#allocation6]
    $region9: #{tpu_custom_call.1} parent=1 // pred_fallthru
      _
    // Predicated region
    $region10: #{tpu_custom_call.1} parent=1 // pred_check
      _
    $region11: #{tpu_custom_call.1} parent=1 // pred_check_branch
      %34 = sbr.rel (0) target = $region13
    $region12: #{tpu_custom_call.1} parent=1 // pred_region
      _
    $region13: #{tpu_custom_call.1} parent=1 // pred_fallthru
      _
    // Predicated region
    $region14: #{tpu_custom_call.1} parent=1 // pred_check
      _
    $region15: #{tpu_custom_call.1} parent=1 // pred_check_branch
      %36 = sbr.rel (0) target = $region17
    $region16: #{tpu_custom_call.1} parent=1 // pred_region
      %38 = vsyncadd [#allocation4], 0
      %s40 = sshll.u32 %s3, 4
      %s41 = int_to_ptr.hbm [resolvable:$true] %s40
      %s42 = sshll.u32 [#allocation7], 4
      %s43 = int_to_ptr.vmem [resolvable:$true] %s42
      %45 = dma.hbm_to_vmem [thread:$0]  %s41, 128, %s43, [#allocation4]
    $region17: #{tpu_custom_call.1} parent=1 // pred_fallthru
      _
    // Predicated region
    $region18: #{tpu_custom_call.1} parent=1 // pred_check
      _
    $region19: #{tpu_custom_call.1} parent=1 // pred_check_branch
      %47 = sbr.rel (0) target = $region21
    $region20: #{tpu_custom_call.1} parent=1 // pred_region
      _
    $region21: #{tpu_custom_call.1} parent=1 // pred_fallthru
      _
    // Predicated region
    $region22: #{tpu_custom_call.1} parent=1 // pred_check
      _
    $region23: #{tpu_custom_call.1} parent=1 // pred_check_branch
      %49 = sbr.rel (0) target = $region25
    $region24: #{tpu_custom_call.1} parent=1 // pred_region
      %51 = vsyncadd [#allocation9], 0
      %s52 = sshll.u32 %s5, 4
      %s53 = int_to_ptr.hbm [resolvable:$true] %s52
      %s54 = sshll.u32 [#allocation8], 4
      %s55 = int_to_ptr.vmem [resolvable:$true] %s54
      %60 = dma.hbm_to_vmem [thread:$0]  %s53, 512, %s55, [#allocation9], 128, 128, 8
    $region25: #{tpu_custom_call.1} parent=1 // pred_fallthru
      _
    // Predicated region
    $region26: #{tpu_custom_call.1} parent=1 // pred_check
      _
    $region27: #{tpu_custom_call.1} parent=1 // pred_check_branch
      %62 = sbr.rel (0) target = $region29
    $region28: #{tpu_custom_call.1} parent=1 // pred_region
      %64 = vsyncadd [#allocation9], 0
      %s66 = sshll.u32 %s6, 4
      %s67 = int_to_ptr.hbm [resolvable:$true] %s66
      %s68 = sshll.u32 [#allocation10], 4
      %s69 = int_to_ptr.vmem [resolvable:$true] %s68
      %71 = dma.hbm_to_vmem [thread:$0]  %s67, 128, %s69, [#allocation9]
    $region29: #{tpu_custom_call.1} parent=1 // pred_fallthru
      _
    // Predicated region
    $region30: #{tpu_custom_call.1} parent=1 // pred_check
      _
    $region31: #{tpu_custom_call.1} parent=1 // pred_check_branch
      %73 = sbr.rel (0) target = $region33
    $region32: #{tpu_custom_call.1} parent=1 // pred_region
      _
    $region33: #{tpu_custom_call.1} parent=1 // pred_fallthru
      _
    // Predicated region
    $region34: #{tpu_custom_call.1} parent=1 // pred_check
      _
    $region35: #{tpu_custom_call.1} parent=1 // pred_check_branch
      %75 = sbr.rel (0) target = $region37
    $region36: #{tpu_custom_call.1} parent=1 // pred_region
      _
    $region37: #{tpu_custom_call.1} parent=1 // pred_fallthru
      _
    // Predicated region
    $region38: #{tpu_custom_call.1} parent=1 // pred_check
      _
    $region39: #{tpu_custom_call.1} parent=1 // pred_check_branch
      %77 = sbr.rel (0) target = $region41
    $region40: #{tpu_custom_call.1} parent=1 // pred_region
      _
    $region41: #{tpu_custom_call.1} parent=1 // pred_fallthru
      _
    // Predicated region
    $region42: #{tpu_custom_call.1} parent=1 // pred_check
      _
    $region43: #{tpu_custom_call.1} parent=1 // pred_check_branch
      %79 = sbr.rel (0) target = $region45
    $region44: #{tpu_custom_call.1} parent=1 // pred_region
      %81 = dma.done [#allocation6], 16
    $region45: #{tpu_custom_call.1} parent=1 // pred_fallthru
      _
    // Predicated region
    $region46: #{tpu_custom_call.1} parent=1 // pred_check
      _
    $region47: #{tpu_custom_call.1} parent=1 // pred_check_branch
      %83 = sbr.rel (0) target = $region49
    $region48: #{tpu_custom_call.1} parent=1 // pred_region
      %85 = dma.done [#allocation4], 128
    $region49: #{tpu_custom_call.1} parent=1 // pred_fallthru
      _
    // Predicated region
    $region50: #{tpu_custom_call.1} parent=1 // pred_check
      _
    $region51: #{tpu_custom_call.1} parent=1 // pred_check_branch
      %87 = sbr.rel (0) target = $region53
    $region52: #{tpu_custom_call.1} parent=1 // pred_region
      %89 = dma.done [#allocation9], 512
    $region53: #{tpu_custom_call.1} parent=1 // pred_fallthru
      _
    // Predicated region
    $region54: #{tpu_custom_call.1} parent=1 // pred_check
      _
    $region55: #{tpu_custom_call.1} parent=1 // pred_check_branch
      %91 = sbr.rel (0) target = $region57
    $region56: #{tpu_custom_call.1} parent=1 // pred_region
      %93 = dma.done [#allocation9], 128
    $region57: #{tpu_custom_call.1} parent=1 // pred_fallthru
      _
    %94 = sfence
    %v95 = vld [vmem:[%s2] sm:$0xff]
    %v96 = vld [vmem:[#allocation7] sm:$0xff]
    %v97 = vld [vmem:[#allocation8] sm:$0xff]
    %v98 = vld [vmem:[#allocation8 + $0x8] sm:$0xff]
    %v99 = vld [vmem:[#allocation8 + $0x10] sm:$0xff]
    %v100 = vld [vmem:[#allocation8 + $0x18] sm:$0xff]
    %v101 = vld [vmem:[#allocation10] sm:$0xff]
    %vm102 = vcmask 64512
    %v104 = vsel %vm102, %v96, 0
    %106 = vmatpush.msra.mxu0 0.0
    %107 = vmatpush.msra.mxu0 0.0
    %108 = vmatpush.msra.mxu0 0.0
    %109 = vmatpush.msra.mxu0 0.0
    %110 = vmatpush.msra.mxu0 0.0
    %111 = vmatpush.msra.mxu0 0.0
    %112 = vmatpush.msra.mxu0 0.0
    %113 = vmatpush.msra.mxu0 0.0
    %114 = vmatpush.msra.mxu0 0.0
    %115 = vmatpush.msra.mxu0 0.0
    %116 = vmatpush.msra.mxu0 0.0
    %117 = vmatpush.msra.mxu0 0.0
    %118 = vmatpush.msra.mxu0 0.0
    %119 = vmatpush.msra.mxu0 0.0
    %120 = vmatpush.msra.mxu0 0.0
    %121 = vmatpush.msra.mxu0 %v101
    %122 = vmatmul.f32.gmra.mxu0 %v104
    %v123 = vpop.f32.mrf.mxu0
    %v124 = vadd.f32 0.0, %v123
    %125 = vdwg.mxu0
    %vm126 = vcmask 261120
    %v128 = vsel %vm126, %v95, 0
    %130 = vmatpush.msra.mxu0 0.0
    %131 = vmatpush.msra.mxu0 0.0
    %132 = vmatpush.msra.mxu0 0.0
    %133 = vmatpush.msra.mxu0 0.0
    %134 = vmatpush.msra.mxu0 0.0
    %135 = vmatpush.msra.mxu0 0.0
    %136 = vmatpush.msra.mxu0 0.0
    %137 = vmatpush.msra.mxu0 0.0
    %138 = vmatpush.msra.mxu0 0.0
    %139 = vmatpush.msra.mxu0 0.0
    %140 = vmatpush.msra.mxu0 0.0
    %141 = vmatpush.msra.mxu0 0.0
    %142 = vmatpush.msra.mxu0 %v100
    %143 = vmatpush.msra.mxu0 %v99
    %144 = vmatpush.msra.mxu0 %v98
    %145 = vmatpush.msra.mxu0 %v97
    %146 = vmatmul.f32.gmra.mxu0 %v128
    %v147 = vpop.f32.mrf.mxu0
    %v148 = vadd.f32 %v124, %v147
    %149 = vdwg.mxu0
    %v150 = vld [vmem:[%s7] sm:$0x1]
    %v152 = vperm.slane %v150, 0
    %v154 = vadd.f32 %v148, %v152
    %s155 = sld [smem:[#allocation3]]
    %vm156 = vcmp.gt.f32.partialorder %v154, 0.0
    %v157 = vstv %s155
    %v158 = vmul.f32 %v157, %v154
    %v159 = vsel %vm156, %v154, %v158
    %v160 = vld [vmem:[%s8] sm:$0x1]
    %v162 = vperm.slane %v160, 0
    %v164 = vmul.f32 %v159, %v162
    %165 = vadd.xlane.f32.xlu0 %v164
    %v166 = vpop.xlane.xlu0 %165
    %v167 = vld [vmem:[%s9] sm:$0x1]
    %v169 = vperm.slane %v167, 0
    %v171 = vmul.f32 %v96, %v169
    %v172 = vsel %vm102, %v171, 0.0
    %173 = vadd.xlane.f32.xlu0 %v172
    %v174 = vpop.xlane.xlu0 %173
    %v175 = vadd.f32 %v166, %v174
    %s176 = sld [smem:[#allocation3 + $0x1]]
    %v177 = vstv %s176
    %v178 = vadd.f32 %v175, %v177
    %vm179 = vcmask 7168
    %180 = vst.msk [vmem:[%s11] sm:$0xff] %vm179, %v178
    %p181 = scmp.eq.s32.totalorder 0, 0
    // Predicated region
    $region58: #{tpu_custom_call.1} parent=1 // pred_check
      %p182 = pneg %p181
    $region59: #{tpu_custom_call.1} parent=1 // pred_check_branch
      %184 = sbr.rel (%p182) target = $region61
    $region60: #{tpu_custom_call.1} parent=1 // pred_region
      %vm185 = vcmask 0
      %186 = vst.msk [vmem:[#allocation11] sm:$0x1] %vm185, 0.0
    $region61: #{tpu_custom_call.1} parent=1 // pred_fallthru
      _
    %v187 = vld [vmem:[%s4] sm:$0xff]
    %v188 = vsub.f32 %v178, %v187
    %v189 = vld [vmem:[#allocation11] sm:$0x1]
    %v190 = vmul.f32 %v188, %v188
    %v191 = vsel %vm179, %v190, 0.0
    %192 = vadd.xlane.f32.xlu0 %v191
    %v193 = vpop.xlane.xlu0 %192
    %v194 = vrot.slane %v193, 4
    %v195 = vadd.f32 %v193, %v194
    %v196 = vrot.slane %v195, 2
    %v197 = vadd.f32 %v195, %v196
    %v198 = vrot.slane %v197, 1
    %v199 = vadd.f32 %v197, %v198
    %s200 = vtos %v199
    %v201 = vstv %s200
    %v202 = vadd.f32 %v189, %v201
    %vm203 = vcmask 0
    %204 = vst.msk [vmem:[#allocation11] sm:$0x1] %vm203, %v202
    // Predicated region
    $region62: #{tpu_custom_call.1} parent=1 // pred_check
      %p205 = pneg %p181
    $region63: #{tpu_custom_call.1} parent=1 // pred_check_branch
      %207 = sbr.rel (%p205) target = $region65
    $region64: #{tpu_custom_call.1} parent=1 // pred_region
      %v208 = vld [vmem:[#allocation11] sm:$0x1]
      %v209 = vmul.f32 %v208, 0.125
      %210 = vst.msk [vmem:[#allocation11] sm:$0x1] %vm203, %v209
    $region65: #{tpu_custom_call.1} parent=1 // pred_fallthru
      _
    // Predicated region
    $region66: #{tpu_custom_call.1} parent=1 // pred_check
      _
    $region67: #{tpu_custom_call.1} parent=1 // pred_check_branch
      %212 = sbr.rel (0) target = $region69
    $region68: #{tpu_custom_call.1} parent=1 // pred_region
      %214 = vsyncadd [#allocation5], 0
      %s216 = sshll.u32 [#allocation11], 4
      %s217 = int_to_ptr.vmem [resolvable:$true] %s216
      %s218 = sshll.u32 %s10, 4
      %s219 = int_to_ptr.hbm [resolvable:$true] %s218
      %221 = dma.vmem_to_hbm [thread:$0]  %s217, 16, %s219, [#allocation5]
    $region69: #{tpu_custom_call.1} parent=1 // pred_fallthru
      _
    // Predicated region
    $region70: #{tpu_custom_call.1} parent=1 // pred_check
      _
    $region71: #{tpu_custom_call.1} parent=1 // pred_check_branch
      %223 = sbr.rel (0) target = $region73
    $region72: #{tpu_custom_call.1} parent=1 // pred_region
      _
    $region73: #{tpu_custom_call.1} parent=1 // pred_fallthru
      _
    // Predicated region
    $region74: #{tpu_custom_call.1} parent=1 // pred_check
      _
    $region75: #{tpu_custom_call.1} parent=1 // pred_check_branch
      %225 = sbr.rel (0) target = $region77
    $region76: #{tpu_custom_call.1} parent=1 // pred_region
      %227 = dma.done [#allocation5], 16
    $region77: #{tpu_custom_call.1} parent=1 // pred_fallthru
      _
    // Predicated region
    $region78: #{tpu_custom_call.1} parent=1 // pred_check
      _
    $region79: #{tpu_custom_call.1} parent=1 // pred_check_branch
      %229 = sbr.rel (0) target = $region81
    $region80: #{tpu_custom_call.1} parent=1 // pred_region
      _
    $region81: #{tpu_custom_call.1} parent=1 // pred_fallthru
      _
    %230 = vsyncpa [#allocation4], 1
    %231 = vsyncpa [#allocation9], 1
    %232 = vsyncpa [#allocation5], 1
    %233 = vsyncpa [#allocation6], 1

</llo_original>
